<compile_context>
chip_gen: v7x
topology: tpu7x:2x2x1
jax: 0.10.0
libtpu: 0.0.40
codegen_flags: <defaults>
</compile_context>

<pallas_src>
import functools
import math

import jax
import jax.numpy as jnp
from jax.experimental import pallas as pl
from jax.experimental.pallas import tpu as pltpu


def _embed_kernel(tok_ref, tab_ref, out_ref, *, charset_pad: int):
    # tok_ref: (1, 1, TB) int32 — lane-dense token ids for this block.
    # tab_ref: (charset_pad, D) f32 — VMEM-resident table, pre-scaled by sqrt(D).
    # out_ref: (TB, D)            — lane/sublane-dense output block.
    tb = out_ref.shape[0]
    tok = tok_ref[0]                                              # (1, TB)
    # One-hot in the (charset_pad, TB) orientation: dim-0 iota vs. a cheap
    # sublane broadcast of the lane-dense token row — no cross-lane relayout.
    row_ids = jax.lax.broadcasted_iota(jnp.int32, (charset_pad, tb), 0)
    onehot = jnp.where(row_ids == tok, jnp.float32(1.0), jnp.float32(0.0))
    # Trans-LHS contraction on the otherwise-idle MXU: out = onehot^T @ table.
    # precision=HIGHEST keeps the f32 table values exact (one-hot is 0/1, so
    # each output row is the pre-scaled table row).
    out = jax.lax.dot_general(
        onehot,
        tab_ref[...],
        dimension_numbers=(((0,), (0,)), ((), ())),
        preferred_element_type=jnp.float32,
        precision=jax.lax.Precision.HIGHEST,
    )
    out_ref[...] = out.astype(out_ref.dtype)


def token_embedding(tokens: jax.Array, table: jax.Array, *, block_tokens: int = 2048) -> jax.Array:
    """Pallas equivalent of `sqrt(D) * nn.Embedding(charset, D)(tokens)`."""
    charset_size, embed_dim = table.shape
    scale = jnp.float32(math.sqrt(embed_dim))
    orig_shape = tokens.shape

    tok_flat = tokens.reshape(-1).astype(jnp.int32)
    n = tok_flat.shape[0]
    if n == 0:
        # Avoid a zero-length grid.
        return jnp.zeros((*orig_shape, embed_dim), table.dtype)

    # Token-block size: as large as allowed (amortizes ~0.35 us/step pipeline
    # overhead), multiple of 8 for sublane-dense output stores, capped by the
    # (8-rounded) token count so small inputs still get a single tight block.
    tb = min(block_tokens, pl.cdiv(n, 8) * 8)
    tb = max(8, tb - (tb % 8))
    n_pad = pl.cdiv(n, tb) * tb
    n_blocks = n_pad // tb
    # Lane-dense token layout: one (1, TB) row per grid step.
    tok_blocks = jnp.pad(tok_flat, (0, n_pad - n)).reshape(n_blocks, 1, tb)

    # Pad the vocab to a multiple of 128 (no more — K=128 already fits one MXU
    # pass and the kernel is store-bound anyway); padded rows stay zero.
    # Fold sqrt(D) into the table once here so the in-kernel one-hot is 0/1.
    charset_pad = pl.cdiv(charset_size, 128) * 128
    table_scaled = (
        jnp.zeros((charset_pad, embed_dim), jnp.float32)
        .at[:charset_size]
        .set(table.astype(jnp.float32) * scale)
    )

    kernel = functools.partial(_embed_kernel, charset_pad=charset_pad)

    grid_spec = pltpu.PrefetchScalarGridSpec(
        num_scalar_prefetch=0,
        grid=(n_blocks,),
        in_specs=[
            # TB lane-dense token ids per grid step (single dense DMA).
            pl.BlockSpec((1, 1, tb), lambda i: (i, 0, 0)),
            # Full pre-scaled table, same block every step -> VMEM-resident.
            pl.BlockSpec((charset_pad, embed_dim), lambda i: (0, 0)),
        ],
        out_specs=pl.BlockSpec((tb, embed_dim), lambda i: (i, 0)),
    )

    out_flat = pl.pallas_call(
        kernel,
        grid_spec=grid_spec,
        out_shape=jax.ShapeDtypeStruct((n_pad, embed_dim), table.dtype),
        compiler_params=pltpu.CompilerParams(
            # Every token block is independent -> lets v7x shard across its
            # two TensorCores when the grid has >= 2 steps; neutral otherwise.
            dimension_semantics=("parallel",),
        ),
    )(tok_blocks, table_scaled)

    return out_flat[:n].reshape(*orig_shape, embed_dim)


if __name__ == "__main__":
    charset_size = 100
    embed_dim = 128
    batch, seq = 2, 8

    key = jax.random.PRNGKey(0)
    k_tab, k_tok = jax.random.split(key)

    # Deterministic synthetic parameters (nn.Embedding weight shape).
    table = jax.random.normal(k_tab, (charset_size, embed_dim), dtype=jnp.float32)
    tokens = jax.random.randint(k_tok, (batch, seq), 0, charset_size, dtype=jnp.int32)

    out = token_embedding(tokens, table)
    out = jax.block_until_ready(out)

    # Reference check (plain JAX) for the forward semantics.
    ref = math.sqrt(embed_dim) * table[tokens]
    assert out.shape == (batch, seq, embed_dim)
    assert jnp.allclose(out, ref, atol=1e-4, rtol=1e-5), "mismatch vs reference"

    print("KERNEL_OK")
</pallas_src>

<mosaic_0001>
module attributes {stable_mosaic.version = 11 : i64} {
  func.func @_embed_kernel(%arg0: i32, %arg1: memref<1x1x16xi32, #tpu.memory_space<vmem>>, %arg2: memref<128x128xf32, #tpu.memory_space<vmem>>, %arg3: memref<16x128xf32, #tpu.memory_space<vmem>>) attributes {dimension_semantics = [#tpu.dimension_semantics<parallel>], iteration_bounds = array<i64: 1>, scalar_prefetch = 0 : i64, scratch_operands = 0 : i64, tpu.core_type = #tpu.core_type<tc>, window_params = [{transform_indices = @transform_0, window_bounds = array<i64: 1, 1, 16>}, {pipeline_mode = #tpu.pipeline_mode<synchronous>, transform_indices = @transform_1, window_bounds = array<i64: 128, 128>}, {transform_indices = @transform_2, window_bounds = array<i64: 16, 128>}]} {
    %c0 = arith.constant 0 : index
    %c0_0 = arith.constant 0 : index
    %c0_1 = arith.constant 0 : index
    %0 = vector.load %arg1[%c0, %c0_0, %c0_1] : memref<1x1x16xi32, #tpu.memory_space<vmem>>, vector<1x1x16xi32>
    %1 = vector.shape_cast %0 : vector<1x1x16xi32> to vector<1x16xi32>
    %2 = tpu.iota {dimensions = array<i32: 0>} : vector<128x16xi32>
    %3 = vector.broadcast %1 : vector<1x16xi32> to vector<128x16xi32>
    %4 = arith.cmpi eq, %2, %3 : vector<128x16xi32>
    %cst = arith.constant 1.000000e+00 : f32
    %cst_2 = arith.constant 0.000000e+00 : f32
    %5 = vector.broadcast %cst : f32 to vector<128x16xf32>
    %6 = vector.broadcast %cst_2 : f32 to vector<128x16xf32>
    %7 = arith.select %4, %5, %6 : vector<128x16xi1>, vector<128x16xf32>
    %c0_3 = arith.constant 0 : index
    %c0_4 = arith.constant 0 : index
    %8 = vector.load %arg2[%c0_3, %c0_4] : memref<128x128xf32, #tpu.memory_space<vmem>>, vector<128x128xf32>
    %cst_5 = arith.constant dense<0.000000e+00> : vector<16x128xf32>
    %9 = tpu.matmul %7, %8, %cst_5 {dimension_numbers = #tpu.dot_dimension_numbers<[0], [0], [1], [1], [0, 1, 1, 1], [], []>, precision = #tpu.contract_precision<fp32>} : vector<128x16xf32>, vector<128x128xf32>, vector<16x128xf32> -> vector<16x128xf32>
    %c0_6 = arith.constant 0 : index
    %c0_7 = arith.constant 0 : index
    %10 = vector.load %arg3[%c0_6, %c0_7] : memref<16x128xf32, #tpu.memory_space<vmem>>, vector<16x128xf32>
    tpu.vector_store %arg3[%c0_6, %c0_7], %9 {strides = array<i32>} : memref<16x128xf32, #tpu.memory_space<vmem>>, vector<16x128xf32>,
    return
  }
  func.func @transform_0(%arg0: i32) -> (i32, i32, i32) {
    %c0_i32 = arith.constant 0 : i32
    %c0_i32_0 = arith.constant 0 : i32
    %c0_i32_1 = arith.constant 0 : i32
    return %arg0, %c0_i32, %c0_i32_0 : i32, i32, i32
  }
  func.func @transform_1(%arg0: i32) -> (i32, i32) {
    %c0_i32 = arith.constant 0 : i32
    %c0_i32_0 = arith.constant 0 : i32
    %c0_i32_1 = arith.constant 0 : i32
    return %c0_i32, %c0_i32_0 : i32, i32
  }
  func.func @transform_2(%arg0: i32) -> (i32, i32) {
    %c0_i32 = arith.constant 0 : i32
    %c0_i32_0 = arith.constant 0 : i32
    return %arg0, %c0_i32 : i32, i32
  }
}

</mosaic_0001>

<llo_original>
// kernel: tpu_custom_call.1
$region0: #{tpu_custom_call.1}
  #allocation0 [shape = 'u32[]', space=smem, size = 0x4, offset = 0x4, fixed_abs, tag = 'smem constant byte address 0x4 - core index']
  #allocation1 [shape = 'u32[144,128]{1,0:T(1,128)}', space=vmem, size = 0x12000, scoped, tag = 'internal scratch']
  %s0 = inlined_call_operand.hbm [shape: s32[1,1,16], index: 0, kind: input, shape index: {}]
  %s1 = inlined_call_operand.hbm [shape: f32[128,128], index: 1, kind: input, shape index: {}]
  %s2 = inlined_call_operand.hbm [shape: f32[16,128], index: 2, kind: output, shape index: {}]
  %s3 = sld [smem:[#allocation0]]
  $region26: #{tpu_custom_call.1} parent=0
    _
  %s5 = ssub.s32 1, %s3
  %s6 = scalar_select 0, %s5, %s3
  $region1: #{tpu_custom_call.1} parent=0
    #allocation2 [shape = 'u8[512]{0}', space=vmem, size = 0x400, scoped, tag = 'input window, operand 0, single buffered']
    #allocation3 [shape = 's32[1]{0}', space=sflag, size = 0x4, scoped, tag = 'scoped memory for tpu_custom_call.1']
    #allocation4 [shape = 's32[1]{0}', space=sflag, size = 0x4, scoped, tag = 'scoped memory for tpu_custom_call.1']
    #allocation5 [shape = 'u8[65536]{0}', space=vmem, size = 0x10000, scoped, tag = 'input window, operand 1, single buffered']
    #allocation6 [shape = 's32[1]{0}', space=sflag, size = 0x4, scoped, tag = 'scoped memory for tpu_custom_call.1']
    #allocation7 [shape = 'u8[8192]{0}', space=vmem, size = 0x2000, scoped, tag = 'output window, operand 0, single buffered']
    %7 = vsyncpa [#allocation3], 0
    %8 = vsyncpa [#allocation6], 0
    %9 = vsyncpa [#allocation4], 0
    // Predicated region
    $region2: #{tpu_custom_call.1} parent=1 // pred_check
      _
    $region3: #{tpu_custom_call.1} parent=1 // pred_check_branch
      %11 = sbr.rel (0) target = $region5
    $region4: #{tpu_custom_call.1} parent=1 // pred_region
      %s13 = ssub.s32 16, 16
      %14 = vsyncadd [#allocation3], %s13
      %s16 = sshll.u32 [#allocation2], 4
      %s17 = int_to_ptr.vmem [resolvable:$true] %s16
      %19 = dma.hbm_to_vmem [thread:$0]  %s0, 16, %s17, [#allocation3]
    $region5: #{tpu_custom_call.1} parent=1 // pred_fallthru
      _
    // Predicated region
    $region6: #{tpu_custom_call.1} parent=1 // pred_check
      _
    $region7: #{tpu_custom_call.1} parent=1 // pred_check_branch
      %21 = sbr.rel (0) target = $region9
    $region8: #{tpu_custom_call.1} parent=1 // pred_region
      %s23 = ssub.s32 2048, 2048
      %24 = vsyncadd [#allocation6], %s23
      %s25 = sshll.u32 [#allocation5], 4
      %s26 = int_to_ptr.vmem [resolvable:$true] %s25
      %31 = dma.hbm_to_vmem [thread:$0]  %s1, 2048, %s26, [#allocation6], 128, 128, 8
    $region9: #{tpu_custom_call.1} parent=1 // pred_fallthru
      _
    // Predicated region
    $region10: #{tpu_custom_call.1} parent=1 // pred_check
      _
    $region11: #{tpu_custom_call.1} parent=1 // pred_check_branch
      %33 = sbr.rel (0) target = $region13
    $region12: #{tpu_custom_call.1} parent=1 // pred_region
      %34 = dma.done [#allocation3], 16
    $region13: #{tpu_custom_call.1} parent=1 // pred_fallthru
      _
    // Predicated region
    $region14: #{tpu_custom_call.1} parent=1 // pred_check
      _
    $region15: #{tpu_custom_call.1} parent=1 // pred_check_branch
      %36 = sbr.rel (0) target = $region17
    $region16: #{tpu_custom_call.1} parent=1 // pred_region
      %37 = dma.done [#allocation6], 2048
    $region17: #{tpu_custom_call.1} parent=1 // pred_fallthru
      _
    %v38 = vld [vmem:[#allocation2] sm:$0x1]
    %v39 = vlaneseq
    %v40 = vshrl.u32 %v39, 7
    %v41 = vadd.s32 %v40, 8
    %v42 = vadd.s32 %v40, 16
    %v43 = vadd.s32 %v40, 24
    %v44 = vadd.s32 %v40, 32
    %v45 = vadd.s32 %v40, 40
    %v46 = vadd.s32 %v40, 48
    %v47 = vadd.s32 %v40, 56
    %v48 = vadd.s32 %v40, 64
    %v49 = vadd.s32 %v40, 72
    %v50 = vadd.s32 %v40, 80
    %v51 = vadd.s32 %v40, 88
    %v52 = vadd.s32 %v40, 96
    %v53 = vadd.s32 %v40, 104
    %v54 = vadd.s32 %v40, 112
    %v55 = vadd.s32 %v40, 120
    %v56 = vlaneseq
    %v57 = vshrl.u32 %v56, 7
    %v58 = vsub.s32 0, %v57
    %v59 = vrot.slane %v38, %v58
    %vm60 = vcmp.eq.s32.totalorder %v40, %v59
    %vm61 = vcmp.eq.s32.totalorder %v41, %v59
    %vm62 = vcmp.eq.s32.totalorder %v42, %v59
    %vm63 = vcmp.eq.s32.totalorder %v43, %v59
    %vm64 = vcmp.eq.s32.totalorder %v44, %v59
    %vm65 = vcmp.eq.s32.totalorder %v45, %v59
    %vm66 = vcmp.eq.s32.totalorder %v46, %v59
    %vm67 = vcmp.eq.s32.totalorder %v47, %v59
    %vm68 = vcmp.eq.s32.totalorder %v48, %v59
    %vm69 = vcmp.eq.s32.totalorder %v49, %v59
    %vm70 = vcmp.eq.s32.totalorder %v50, %v59
    %vm71 = vcmp.eq.s32.totalorder %v51, %v59
    %vm72 = vcmp.eq.s32.totalorder %v52, %v59
    %vm73 = vcmp.eq.s32.totalorder %v53, %v59
    %vm74 = vcmp.eq.s32.totalorder %v54, %v59
    %vm75 = vcmp.eq.s32.totalorder %v55, %v59
    %v76 = vsel %vm60, 1.0, 0.0
    %v77 = vsel %vm61, 1.0, 0.0
    %v78 = vsel %vm62, 1.0, 0.0
    %v79 = vsel %vm63, 1.0, 0.0
    %v80 = vsel %vm64, 1.0, 0.0
    %v81 = vsel %vm65, 1.0, 0.0
    %v82 = vsel %vm66, 1.0, 0.0
    %v83 = vsel %vm67, 1.0, 0.0
    %v84 = vsel %vm68, 1.0, 0.0
    %v85 = vsel %vm69, 1.0, 0.0
    %v86 = vsel %vm70, 1.0, 0.0
    %v87 = vsel %vm71, 1.0, 0.0
    %v88 = vsel %vm72, 1.0, 0.0
    %v89 = vsel %vm73, 1.0, 0.0
    %v90 = vsel %vm74, 1.0, 0.0
    %v91 = vsel %vm75, 1.0, 0.0
    %v92 = vld [vmem:[#allocation5] sm:$0xff]
    %v93 = vld [vmem:[#allocation5 + $0x8] sm:$0xff]
    %v94 = vld [vmem:[#allocation5 + $0x10] sm:$0xff]
    %v95 = vld [vmem:[#allocation5 + $0x18] sm:$0xff]
    %v96 = vld [vmem:[#allocation5 + $0x20] sm:$0xff]
    %v97 = vld [vmem:[#allocation5 + $0x28] sm:$0xff]
    %v98 = vld [vmem:[#allocation5 + $0x30] sm:$0xff]
    %v99 = vld [vmem:[#allocation5 + $0x38] sm:$0xff]
    %v100 = vld [vmem:[#allocation5 + $0x40] sm:$0xff]
    %v101 = vld [vmem:[#allocation5 + $0x48] sm:$0xff]
    %v102 = vld [vmem:[#allocation5 + $0x50] sm:$0xff]
    %v103 = vld [vmem:[#allocation5 + $0x58] sm:$0xff]
    %v104 = vld [vmem:[#allocation5 + $0x60] sm:$0xff]
    %v105 = vld [vmem:[#allocation5 + $0x68] sm:$0xff]
    %v106 = vld [vmem:[#allocation5 + $0x70] sm:$0xff]
    %v107 = vld [vmem:[#allocation5 + $0x78] sm:$0xff]
    %108 = vxpose.xlu0.b32.start [1/16] %v76, 128
    %109 = vxpose.xlu0.b32.cont [2/16] %v77, 128
    %110 = vxpose.xlu0.b32.cont [3/16] %v78, 128
    %111 = vxpose.xlu0.b32.cont [4/16] %v79, 128
    %112 = vxpose.xlu0.b32.cont [5/16] %v80, 128
    %113 = vxpose.xlu0.b32.cont [6/16] %v81, 128
    %114 = vxpose.xlu0.b32.cont [7/16] %v82, 128
    %115 = vxpose.xlu0.b32.cont [8/16] %v83, 128
    %116 = vxpose.xlu0.b32.cont [9/16] %v84, 128
    %117 = vxpose.xlu0.b32.cont [10/16] %v85, 128
    %118 = vxpose.xlu0.b32.cont [11/16] %v86, 128
    %119 = vxpose.xlu0.b32.cont [12/16] %v87, 128
    %120 = vxpose.xlu0.b32.cont [13/16] %v88, 128
    %121 = vxpose.xlu0.b32.cont [14/16] %v89, 128
    %122 = vxpose.xlu0.b32.cont [15/16] %v90, 128
    %123 = vxpose.xlu0.b32.end [16/16] %v91, 128
    %v124 = vpop.trf.xlu0
    %v125 = vpop.trf.xlu0
    %v126 = vpop.trf.xlu0
    %v127 = vpop.trf.xlu0
    %v128 = vpop.trf.xlu0
    %v129 = vpop.trf.xlu0
    %v130 = vpop.trf.xlu0
    %v131 = vpop.trf.xlu0
    %v132 = vpop.trf.xlu0
    %v133 = vpop.trf.xlu0
    %v134 = vpop.trf.xlu0
    %v135 = vpop.trf.xlu0
    %v136 = vpop.trf.xlu0
    %v137 = vpop.trf.xlu0
    %v138 = vpop.trf.xlu0
    %v139 = vpop.trf.xlu0
    %140 = vmatprep.subr.mxu0 0.0
    %v141 = vand.u32 %v92, 4294901760
    %142 = vmatpush1.msra.mxu0 %v141
    %143 = vmatprep.subr.mxu0 0.0
    %v144 = vand.u32 %v93, 4294901760
    %145 = vmatpush1.msra.mxu0 %v144
    %146 = vmatprep.subr.mxu0 0.0
    %v147 = vand.u32 %v94, 4294901760
    %148 = vmatpush1.msra.mxu0 %v147
    %149 = vmatprep.subr.mxu0 0.0
    %v150 = vand.u32 %v95, 4294901760
    %151 = vmatpush1.msra.mxu0 %v150
    %152 = vmatprep.subr.mxu0 0.0
    %v153 = vand.u32 %v96, 4294901760
    %154 = vmatpush1.msra.mxu0 %v153
    %155 = vmatprep.subr.mxu0 0.0
    %v156 = vand.u32 %v97, 4294901760
    %157 = vmatpush1.msra.mxu0 %v156
    %158 = vmatprep.subr.mxu0 0.0
    %v159 = vand.u32 %v98, 4294901760
    %160 = vmatpush1.msra.mxu0 %v159
    %161 = vmatprep.subr.mxu0 0.0
    %v162 = vand.u32 %v99, 4294901760
    %163 = vmatpush1.msra.mxu0 %v162
    %164 = vmatprep.subr.mxu0 0.0
    %v165 = vand.u32 %v100, 4294901760
    %166 = vmatpush1.msra.mxu0 %v165
    %167 = vmatprep.subr.mxu0 0.0
    %v168 = vand.u32 %v101, 4294901760
    %169 = vmatpush1.msra.mxu0 %v168
    %170 = vmatprep.subr.mxu0 0.0
    %v171 = vand.u32 %v102, 4294901760
    %172 = vmatpush1.msra.mxu0 %v171
    %173 = vmatprep.subr.mxu0 0.0
    %v174 = vand.u32 %v103, 4294901760
    %175 = vmatpush1.msra.mxu0 %v174
    %176 = vmatprep.subr.mxu0 0.0
    %v177 = vand.u32 %v104, 4294901760
    %178 = vmatpush1.msra.mxu0 %v177
    %179 = vmatprep.subr.mxu0 0.0
    %v180 = vand.u32 %v105, 4294901760
    %181 = vmatpush1.msra.mxu0 %v180
    %182 = vmatprep.subr.mxu0 0.0
    %v183 = vand.u32 %v106, 4294901760
    %184 = vmatpush1.msra.mxu0 %v183
    %185 = vmatprep.subr.mxu0 0.0
    %v186 = vand.u32 %v107, 4294901760
    %187 = vmatpush1.msra.mxu0 %v186
    %188 = vmatprep.subr.mxu0 0.0
    %189 = vmatpush1.msra.mxu0 0.0
    %190 = vmatprep.subr.mxu0 0.0
    %191 = vmatpush1.msra.mxu0 0.0
    %192 = vmatprep.subr.mxu0 0.0
    %193 = vmatpush1.msra.mxu0 0.0
    %194 = vmatprep.subr.mxu0 0.0
    %195 = vmatpush1.msra.mxu0 0.0
    %196 = vmatprep.subr.mxu0 0.0
    %197 = vmatpush1.msra.mxu0 0.0
    %198 = vmatprep.subr.mxu0 0.0
    %199 = vmatpush1.msra.mxu0 0.0
    %200 = vmatprep.subr.mxu0 0.0
    %201 = vmatpush1.msra.mxu0 0.0
    %202 = vmatprep.subr.mxu0 0.0
    %203 = vmatpush1.msra.mxu0 0.0
    %204 = vmatprep.subr.mxu0 0.0
    %205 = vmatpush1.msra.mxu0 0.0
    %206 = vmatprep.subr.mxu0 0.0
    %207 = vmatpush1.msra.mxu0 0.0
    %208 = vmatprep.subr.mxu0 0.0
    %209 = vmatpush1.msra.mxu0 0.0
    %210 = vmatprep.subr.mxu0 0.0
    %211 = vmatpush1.msra.mxu0 0.0
    %212 = vmatprep.subr.mxu0 0.0
    %213 = vmatpush1.msra.mxu0 0.0
    %214 = vmatprep.subr.mxu0 0.0
    %215 = vmatpush1.msra.mxu0 0.0
    %216 = vmatprep.subr.mxu0 0.0
    %217 = vmatpush1.msra.mxu0 0.0
    %218 = vmatprep.subr.mxu0 0.0
    %219 = vmatpush1.msra.mxu0 0.0
    %220 = vmatprep.mubr.f32.mxu0 0.0
    %v221 = vand.u32 %v124, 4294901760
    %v222 = vsub.f32 %v124, %v221
    %v223 = vand.u32 %v222, 4294901760
    %v224 = vsub.f32 %v222, %v223
    %v225 = vand.u32 %v224, 4294901760
    %226 = vmatmul.mubr.f32.gmra.mrb[0].mxu0 %v225
    %v227 = vpop.f32.mrb[0].mxu0
    %v228 = vadd.f32 0.0, %v227
    %v229 = vpop.f32.mrb[0].mxu0
    %230 = vmatprep.mubr.f32.mxu0 0.0
    %v231 = vand.u32 %v125, 4294901760
    %v232 = vsub.f32 %v125, %v231
    %v233 = vand.u32 %v232, 4294901760
    %v234 = vsub.f32 %v232, %v233
    %v235 = vand.u32 %v234, 4294901760
    %236 = vmatmul.mubr.f32.gmra.mrb[0].mxu0 %v235
    %v237 = vpop.f32.mrb[0].mxu0
    %v238 = vadd.f32 0.0, %v237
    %v239 = vpop.f32.mrb[0].mxu0
    %240 = vdwg.mxu0
    %241 = vmatprep.subr.mxu0 0.0
    %v242 = vand.u32 %v92, 4294901760
    %v243 = vsub.f32 %v92, %v242
    %v244 = vand.u32 %v243, 4294901760
    %v245 = vsub.f32 %v243, %v244
    %v246 = vand.u32 %v245, 4294901760
    %247 = vmatpush1.msra.mxu0 %v246
    %248 = vmatprep.subr.mxu0 0.0
    %v249 = vand.u32 %v93, 4294901760
    %v250 = vsub.f32 %v93, %v249
    %v251 = vand.u32 %v250, 4294901760
    %v252 = vsub.f32 %v250, %v251
    %v253 = vand.u32 %v252, 4294901760
    %254 = vmatpush1.msra.mxu0 %v253
    %255 = vmatprep.subr.mxu0 0.0
    %v256 = vand.u32 %v94, 4294901760
    %v257 = vsub.f32 %v94, %v256
    %v258 = vand.u32 %v257, 4294901760
    %v259 = vsub.f32 %v257, %v258
    %v260 = vand.u32 %v259, 4294901760
    %261 = vmatpush1.msra.mxu0 %v260
    %262 = vmatprep.subr.mxu0 0.0
    %v263 = vand.u32 %v95, 4294901760
    %v264 = vsub.f32 %v95, %v263
    %v265 = vand.u32 %v264, 4294901760
    %v266 = vsub.f32 %v264, %v265
    %v267 = vand.u32 %v266, 4294901760
    %268 = vmatpush1.msra.mxu0 %v267
    %269 = vmatprep.subr.mxu0 0.0
    %v270 = vand.u32 %v96, 4294901760
    %v271 = vsub.f32 %v96, %v270
    %v272 = vand.u32 %v271, 4294901760
    %v273 = vsub.f32 %v271, %v272
    %v274 = vand.u32 %v273, 4294901760
    %275 = vmatpush1.msra.mxu0 %v274
    %276 = vmatprep.subr.mxu0 0.0
    %v277 = vand.u32 %v97, 4294901760
    %v278 = vsub.f32 %v97, %v277
    %v279 = vand.u32 %v278, 4294901760
    %v280 = vsub.f32 %v278, %v279
    %v281 = vand.u32 %v280, 4294901760
    %282 = vmatpush1.msra.mxu0 %v281
    %283 = vmatprep.subr.mxu0 0.0
    %v284 = vand.u32 %v98, 4294901760
    %v285 = vsub.f32 %v98, %v284
    %v286 = vand.u32 %v285, 4294901760
    %v287 = vsub.f32 %v285, %v286
    %v288 = vand.u32 %v287, 4294901760
    %289 = vmatpush1.msra.mxu0 %v288
    %290 = vmatprep.subr.mxu0 0.0
    %v291 = vand.u32 %v99, 4294901760
    %v292 = vsub.f32 %v99, %v291
    %v293 = vand.u32 %v292, 4294901760
    %v294 = vsub.f32 %v292, %v293
    %v295 = vand.u32 %v294, 4294901760
    %296 = vmatpush1.msra.mxu0 %v295
    %297 = vmatprep.subr.mxu0 0.0
    %v298 = vand.u32 %v100, 4294901760
    %v299 = vsub.f32 %v100, %v298
    %v300 = vand.u32 %v299, 4294901760
    %v301 = vsub.f32 %v299, %v300
    %v302 = vand.u32 %v301, 4294901760
    %303 = vmatpush1.msra.mxu0 %v302
    %304 = vmatprep.subr.mxu0 0.0
    %v305 = vand.u32 %v101, 4294901760
    %v306 = vsub.f32 %v101, %v305
    %v307 = vand.u32 %v306, 4294901760
    %v308 = vsub.f32 %v306, %v307
    %v309 = vand.u32 %v308, 4294901760
    %310 = vmatpush1.msra.mxu0 %v309
    %311 = vmatprep.subr.mxu0 0.0
    %v312 = vand.u32 %v102, 4294901760
    %v313 = vsub.f32 %v102, %v312
    %v314 = vand.u32 %v313, 4294901760
    %v315 = vsub.f32 %v313, %v314
    %v316 = vand.u32 %v315, 4294901760
    %317 = vmatpush1.msra.mxu0 %v316
    %318 = vmatprep.subr.mxu0 0.0
    %v319 = vand.u32 %v103, 4294901760
    %v320 = vsub.f32 %v103, %v319
    %v321 = vand.u32 %v320, 4294901760
    %v322 = vsub.f32 %v320, %v321
    %v323 = vand.u32 %v322, 4294901760
    %324 = vmatpush1.msra.mxu0 %v323
    %325 = vmatprep.subr.mxu0 0.0
    %v326 = vand.u32 %v104, 4294901760
    %v327 = vsub.f32 %v104, %v326
    %v328 = vand.u32 %v327, 4294901760
    %v329 = vsub.f32 %v327, %v328
    %v330 = vand.u32 %v329, 4294901760
    %331 = vmatpush1.msra.mxu0 %v330
    %332 = vmatprep.subr.mxu0 0.0
    %v333 = vand.u32 %v105, 4294901760
    %v334 = vsub.f32 %v105, %v333
    %v335 = vand.u32 %v334, 4294901760
    %v336 = vsub.f32 %v334, %v335
    %v337 = vand.u32 %v336, 4294901760
    %338 = vmatpush1.msra.mxu0 %v337
    %339 = vmatprep.subr.mxu0 0.0
    %v340 = vand.u32 %v106, 4294901760
    %v341 = vsub.f32 %v106, %v340
    %v342 = vand.u32 %v341, 4294901760
    %v343 = vsub.f32 %v341, %v342
    %v344 = vand.u32 %v343, 4294901760
    %345 = vmatpush1.msra.mxu0 %v344
    %346 = vmatprep.subr.mxu0 0.0
    %v347 = vand.u32 %v107, 4294901760
    %v348 = vsub.f32 %v107, %v347
    %v349 = vand.u32 %v348, 4294901760
    %v350 = vsub.f32 %v348, %v349
    %v351 = vand.u32 %v350, 4294901760
    %352 = vmatpush1.msra.mxu0 %v351
    %353 = vmatprep.subr.mxu0 0.0
    %354 = vmatpush1.msra.mxu0 0.0
    %355 = vmatprep.subr.mxu0 0.0
    %356 = vmatpush1.msra.mxu0 0.0
    %357 = vmatprep.subr.mxu0 0.0
    %358 = vmatpush1.msra.mxu0 0.0
    %359 = vmatprep.subr.mxu0 0.0
    %360 = vmatpush1.msra.mxu0 0.0
    %361 = vmatprep.subr.mxu0 0.0
    %362 = vmatpush1.msra.mxu0 0.0
    %363 = vmatprep.subr.mxu0 0.0
    %364 = vmatpush1.msra.mxu0 0.0
    %365 = vmatprep.subr.mxu0 0.0
    %366 = vmatpush1.msra.mxu0 0.0
    %367 = vmatprep.subr.mxu0 0.0
    %368 = vmatpush1.msra.mxu0 0.0
    %369 = vmatprep.subr.mxu0 0.0
    %370 = vmatpush1.msra.mxu0 0.0
    %371 = vmatprep.subr.mxu0 0.0
    %372 = vmatpush1.msra.mxu0 0.0
    %373 = vmatprep.subr.mxu0 0.0
    %374 = vmatpush1.msra.mxu0 0.0
    %375 = vmatprep.subr.mxu0 0.0
    %376 = vmatpush1.msra.mxu0 0.0
    %377 = vmatprep.subr.mxu0 0.0
    %378 = vmatpush1.msra.mxu0 0.0
    %379 = vmatprep.subr.mxu0 0.0
    %380 = vmatpush1.msra.mxu0 0.0
    %381 = vmatprep.subr.mxu0 0.0
    %382 = vmatpush1.msra.mxu0 0.0
    %383 = vmatprep.subr.mxu0 0.0
    %384 = vmatpush1.msra.mxu0 0.0
    %385 = vmatprep.mubr.f32.mxu0 0.0
    %v386 = vand.u32 %v124, 4294901760
    %387 = vmatmul.mubr.f32.gmra.mrb[0].mxu0 %v386
    %v388 = vpop.f32.mrb[0].mxu0
    %v389 = vadd.f32 %v228, %v388
    %v390 = vpop.f32.mrb[0].mxu0
    %391 = vmatprep.mubr.f32.mxu0 0.0
    %v392 = vand.u32 %v125, 4294901760
    %393 = vmatmul.mubr.f32.gmra.mrb[0].mxu0 %v392
    %v394 = vpop.f32.mrb[0].mxu0
    %v395 = vadd.f32 %v238, %v394
    %v396 = vpop.f32.mrb[0].mxu0
    %397 = vdwg.mxu0
    %398 = vmatprep.subr.mxu0 0.0
    %v399 = vand.u32 %v92, 4294901760
    %v400 = vsub.f32 %v92, %v399
    %401 = vmatpush1.msra.mxu0 %v400
    %402 = vmatprep.subr.mxu0 0.0
    %v403 = vand.u32 %v93, 4294901760
    %v404 = vsub.f32 %v93, %v403
    %405 = vmatpush1.msra.mxu0 %v404
    %406 = vmatprep.subr.mxu0 0.0
    %v407 = vand.u32 %v94, 4294901760
    %v408 = vsub.f32 %v94, %v407
    %409 = vmatpush1.msra.mxu0 %v408
    %410 = vmatprep.subr.mxu0 0.0
    %v411 = vand.u32 %v95, 4294901760
    %v412 = vsub.f32 %v95, %v411
    %413 = vmatpush1.msra.mxu0 %v412
    %414 = vmatprep.subr.mxu0 0.0
    %v415 = vand.u32 %v96, 4294901760
    %v416 = vsub.f32 %v96, %v415
    %417 = vmatpush1.msra.mxu0 %v416
    %418 = vmatprep.subr.mxu0 0.0
    %v419 = vand.u32 %v97, 4294901760
    %v420 = vsub.f32 %v97, %v419
    %421 = vmatpush1.msra.mxu0 %v420
    %422 = vmatprep.subr.mxu0 0.0
    %v423 = vand.u32 %v98, 4294901760
    %v424 = vsub.f32 %v98, %v423
    %425 = vmatpush1.msra.mxu0 %v424
    %426 = vmatprep.subr.mxu0 0.0
    %v427 = vand.u32 %v99, 4294901760
    %v428 = vsub.f32 %v99, %v427
    %429 = vmatpush1.msra.mxu0 %v428
    %430 = vmatprep.subr.mxu0 0.0
    %v431 = vand.u32 %v100, 4294901760
    %v432 = vsub.f32 %v100, %v431
    %433 = vmatpush1.msra.mxu0 %v432
    %434 = vmatprep.subr.mxu0 0.0
    %v435 = vand.u32 %v101, 4294901760
    %v436 = vsub.f32 %v101, %v435
    %437 = vmatpush1.msra.mxu0 %v436
    %438 = vmatprep.subr.mxu0 0.0
    %v439 = vand.u32 %v102, 4294901760
    %v440 = vsub.f32 %v102, %v439
    %441 = vmatpush1.msra.mxu0 %v440
    %442 = vmatprep.subr.mxu0 0.0
    %v443 = vand.u32 %v103, 4294901760
    %v444 = vsub.f32 %v103, %v443
    %445 = vmatpush1.msra.mxu0 %v444
    %446 = vmatprep.subr.mxu0 0.0
    %v447 = vand.u32 %v104, 4294901760
    %v448 = vsub.f32 %v104, %v447
    %449 = vmatpush1.msra.mxu0 %v448
    %450 = vmatprep.subr.mxu0 0.0
    %v451 = vand.u32 %v105, 4294901760
    %v452 = vsub.f32 %v105, %v451
    %453 = vmatpush1.msra.mxu0 %v452
    %454 = vmatprep.subr.mxu0 0.0
    %v455 = vand.u32 %v106, 4294901760
    %v456 = vsub.f32 %v106, %v455
    %457 = vmatpush1.msra.mxu0 %v456
    %458 = vmatprep.subr.mxu0 0.0
    %v459 = vand.u32 %v107, 4294901760
    %v460 = vsub.f32 %v107, %v459
    %461 = vmatpush1.msra.mxu0 %v460
    %462 = vmatprep.subr.mxu0 0.0
    %463 = vmatpush1.msra.mxu0 0.0
    %464 = vmatprep.subr.mxu0 0.0
    %465 = vmatpush1.msra.mxu0 0.0
    %466 = vmatprep.subr.mxu0 0.0
    %467 = vmatpush1.msra.mxu0 0.0
    %468 = vmatprep.subr.mxu0 0.0
    %469 = vmatpush1.msra.mxu0 0.0
    %470 = vmatprep.subr.mxu0 0.0
    %471 = vmatpush1.msra.mxu0 0.0
    %472 = vmatprep.subr.mxu0 0.0
    %473 = vmatpush1.msra.mxu0 0.0
    %474 = vmatprep.subr.mxu0 0.0
    %475 = vmatpush1.msra.mxu0 0.0
    %476 = vmatprep.subr.mxu0 0.0
    %477 = vmatpush1.msra.mxu0 0.0
    %478 = vmatprep.subr.mxu0 0.0
    %479 = vmatpush1.msra.mxu0 0.0
    %480 = vmatprep.subr.mxu0 0.0
    %481 = vmatpush1.msra.mxu0 0.0
    %482 = vmatprep.subr.mxu0 0.0
    %483 = vmatpush1.msra.mxu0 0.0
    %484 = vmatprep.subr.mxu0 0.0
    %485 = vmatpush1.msra.mxu0 0.0
    %486 = vmatprep.subr.mxu0 0.0
    %487 = vmatpush1.msra.mxu0 0.0
    %488 = vmatprep.subr.mxu0 0.0
    %489 = vmatpush1.msra.mxu0 0.0
    %490 = vmatprep.subr.mxu0 0.0
    %491 = vmatpush1.msra.mxu0 0.0
    %492 = vmatprep.subr.mxu0 0.0
    %493 = vmatpush1.msra.mxu0 0.0
    %494 = vmatprep.mubr.f32.mxu0 0.0
    %v495 = vand.u32 %v124, 4294901760
    %v496 = vsub.f32 %v124, %v495
    %497 = vmatmul.mubr.f32.gmra.mrb[0].mxu0 %v496
    %v498 = vpop.f32.mrb[0].mxu0
    %v499 = vadd.f32 %v389, %v498
    %v500 = vpop.f32.mrb[0].mxu0
    %501 = vmatprep.mubr.f32.mxu0 0.0
    %v502 = vand.u32 %v125, 4294901760
    %v503 = vsub.f32 %v125, %v502
    %504 = vmatmul.mubr.f32.gmra.mrb[0].mxu0 %v503
    %v505 = vpop.f32.mrb[0].mxu0
    %v506 = vadd.f32 %v395, %v505
    %v507 = vpop.f32.mrb[0].mxu0
    %508 = vdwg.mxu0
    %509 = vmatprep.subr.mxu0 0.0
    %v510 = vand.u32 %v92, 4294901760
    %511 = vmatpush1.msra.mxu0 %v510
    %512 = vmatprep.subr.mxu0 0.0
    %v513 = vand.u32 %v93, 4294901760
    %514 = vmatpush1.msra.mxu0 %v513
    %515 = vmatprep.subr.mxu0 0.0
    %v516 = vand.u32 %v94, 4294901760
    %517 = vmatpush1.msra.mxu0 %v516
    %518 = vmatprep.subr.mxu0 0.0
    %v519 = vand.u32 %v95, 4294901760
    %520 = vmatpush1.msra.mxu0 %v519
    %521 = vmatprep.subr.mxu0 0.0
    %v522 = vand.u32 %v96, 4294901760
    %523 = vmatpush1.msra.mxu0 %v522
    %524 = vmatprep.subr.mxu0 0.0
    %v525 = vand.u32 %v97, 4294901760
    %526 = vmatpush1.msra.mxu0 %v525
    %527 = vmatprep.subr.mxu0 0.0
    %v528 = vand.u32 %v98, 4294901760
    %529 = vmatpush1.msra.mxu0 %v528
    %530 = vmatprep.subr.mxu0 0.0
    %v531 = vand.u32 %v99, 4294901760
    %532 = vmatpush1.msra.mxu0 %v531
    %533 = vmatprep.subr.mxu0 0.0
    %v534 = vand.u32 %v100, 4294901760
    %535 = vmatpush1.msra.mxu0 %v534
    %536 = vmatprep.subr.mxu0 0.0
    %v537 = vand.u32 %v101, 4294901760
    %538 = vmatpush1.msra.mxu0 %v537
    %539 = vmatprep.subr.mxu0 0.0
    %v540 = vand.u32 %v102, 4294901760
    %541 = vmatpush1.msra.mxu0 %v540
    %542 = vmatprep.subr.mxu0 0.0
    %v543 = vand.u32 %v103, 4294901760
    %544 = vmatpush1.msra.mxu0 %v543
    %545 = vmatprep.subr.mxu0 0.0
    %v546 = vand.u32 %v104, 4294901760
    %547 = vmatpush1.msra.mxu0 %v546
    %548 = vmatprep.subr.mxu0 0.0
    %v549 = vand.u32 %v105, 4294901760
    %550 = vmatpush1.msra.mxu0 %v549
    %551 = vmatprep.subr.mxu0 0.0
    %v552 = vand.u32 %v106, 4294901760
    %553 = vmatpush1.msra.mxu0 %v552
    %554 = vmatprep.subr.mxu0 0.0
    %v555 = vand.u32 %v107, 4294901760
    %556 = vmatpush1.msra.mxu0 %v555
    %557 = vmatprep.subr.mxu0 0.0
    %558 = vmatpush1.msra.mxu0 0.0
    %559 = vmatprep.subr.mxu0 0.0
    %560 = vmatpush1.msra.mxu0 0.0
    %561 = vmatprep.subr.mxu0 0.0
    %562 = vmatpush1.msra.mxu0 0.0
    %563 = vmatprep.subr.mxu0 0.0
    %564 = vmatpush1.msra.mxu0 0.0
    %565 = vmatprep.subr.mxu0 0.0
    %566 = vmatpush1.msra.mxu0 0.0
    %567 = vmatprep.subr.mxu0 0.0
    %568 = vmatpush1.msra.mxu0 0.0
    %569 = vmatprep.subr.mxu0 0.0
    %570 = vmatpush1.msra.mxu0 0.0
    %571 = vmatprep.subr.mxu0 0.0
    %572 = vmatpush1.msra.mxu0 0.0
    %573 = vmatprep.subr.mxu0 0.0
    %574 = vmatpush1.msra.mxu0 0.0
    %575 = vmatprep.subr.mxu0 0.0
    %576 = vmatpush1.msra.mxu0 0.0
    %577 = vmatprep.subr.mxu0 0.0
    %578 = vmatpush1.msra.mxu0 0.0
    %579 = vmatprep.subr.mxu0 0.0
    %580 = vmatpush1.msra.mxu0 0.0
    %581 = vmatprep.subr.mxu0 0.0
    %582 = vmatpush1.msra.mxu0 0.0
    %583 = vmatprep.subr.mxu0 0.0
    %584 = vmatpush1.msra.mxu0 0.0
    %585 = vmatprep.subr.mxu0 0.0
    %586 = vmatpush1.msra.mxu0 0.0
    %587 = vmatprep.subr.mxu0 0.0
    %588 = vmatpush1.msra.mxu0 0.0
    %589 = vmatprep.mubr.f32.mxu0 0.0
    %v590 = vand.u32 %v124, 4294901760
    %v591 = vsub.f32 %v124, %v590
    %v592 = vand.u32 %v591, 4294901760
    %593 = vmatmul.mubr.f32.gmra.mrb[0].mxu0 %v592
    %v594 = vpop.f32.mrb[0].mxu0
    %v595 = vadd.f32 %v499, %v594
    %v596 = vpop.f32.mrb[0].mxu0
    %597 = vmatprep.mubr.f32.mxu0 0.0
    %v598 = vand.u32 %v125, 4294901760
    %v599 = vsub.f32 %v125, %v598
    %v600 = vand.u32 %v599, 4294901760
    %601 = vmatmul.mubr.f32.gmra.mrb[0].mxu0 %v600
    %v602 = vpop.f32.mrb[0].mxu0
    %v603 = vadd.f32 %v506, %v602
    %v604 = vpop.f32.mrb[0].mxu0
    %605 = vdwg.mxu0
    %606 = vmatprep.subr.mxu0 0.0
    %v607 = vand.u32 %v92, 4294901760
    %v608 = vsub.f32 %v92, %v607
    %v609 = vand.u32 %v608, 4294901760
    %610 = vmatpush1.msra.mxu0 %v609
    %611 = vmatprep.subr.mxu0 0.0
    %v612 = vand.u32 %v93, 4294901760
    %v613 = vsub.f32 %v93, %v612
    %v614 = vand.u32 %v613, 4294901760
    %615 = vmatpush1.msra.mxu0 %v614
    %616 = vmatprep.subr.mxu0 0.0
    %v617 = vand.u32 %v94, 4294901760
    %v618 = vsub.f32 %v94, %v617
    %v619 = vand.u32 %v618, 4294901760
    %620 = vmatpush1.msra.mxu0 %v619
    %621 = vmatprep.subr.mxu0 0.0
    %v622 = vand.u32 %v95, 4294901760
    %v623 = vsub.f32 %v95, %v622
    %v624 = vand.u32 %v623, 4294901760
    %625 = vmatpush1.msra.mxu0 %v624
    %626 = vmatprep.subr.mxu0 0.0
    %v627 = vand.u32 %v96, 4294901760
    %v628 = vsub.f32 %v96, %v627
    %v629 = vand.u32 %v628, 4294901760
    %630 = vmatpush1.msra.mxu0 %v629
    %631 = vmatprep.subr.mxu0 0.0
    %v632 = vand.u32 %v97, 4294901760
    %v633 = vsub.f32 %v97, %v632
    %v634 = vand.u32 %v633, 4294901760
    %635 = vmatpush1.msra.mxu0 %v634
    %636 = vmatprep.subr.mxu0 0.0
    %v637 = vand.u32 %v98, 4294901760
    %v638 = vsub.f32 %v98, %v637
    %v639 = vand.u32 %v638, 4294901760
    %640 = vmatpush1.msra.mxu0 %v639
    %641 = vmatprep.subr.mxu0 0.0
    %v642 = vand.u32 %v99, 4294901760
    %v643 = vsub.f32 %v99, %v642
    %v644 = vand.u32 %v643, 4294901760
    %645 = vmatpush1.msra.mxu0 %v644
    %646 = vmatprep.subr.mxu0 0.0
    %v647 = vand.u32 %v100, 4294901760
    %v648 = vsub.f32 %v100, %v647
    %v649 = vand.u32 %v648, 4294901760
    %650 = vmatpush1.msra.mxu0 %v649
    %651 = vmatprep.subr.mxu0 0.0
    %v652 = vand.u32 %v101, 4294901760
    %v653 = vsub.f32 %v101, %v652
    %v654 = vand.u32 %v653, 4294901760
    %655 = vmatpush1.msra.mxu0 %v654
    %656 = vmatprep.subr.mxu0 0.0
    %v657 = vand.u32 %v102, 4294901760
    %v658 = vsub.f32 %v102, %v657
    %v659 = vand.u32 %v658, 4294901760
    %660 = vmatpush1.msra.mxu0 %v659
    %661 = vmatprep.subr.mxu0 0.0
    %v662 = vand.u32 %v103, 4294901760
    %v663 = vsub.f32 %v103, %v662
    %v664 = vand.u32 %v663, 4294901760
    %665 = vmatpush1.msra.mxu0 %v664
    %666 = vmatprep.subr.mxu0 0.0
    %v667 = vand.u32 %v104, 4294901760
    %v668 = vsub.f32 %v104, %v667
    %v669 = vand.u32 %v668, 4294901760
    %670 = vmatpush1.msra.mxu0 %v669
    %671 = vmatprep.subr.mxu0 0.0
    %v672 = vand.u32 %v105, 4294901760
    %v673 = vsub.f32 %v105, %v672
    %v674 = vand.u32 %v673, 4294901760
    %675 = vmatpush1.msra.mxu0 %v674
    %676 = vmatprep.subr.mxu0 0.0
    %v677 = vand.u32 %v106, 4294901760
    %v678 = vsub.f32 %v106, %v677
    %v679 = vand.u32 %v678, 4294901760
    %680 = vmatpush1.msra.mxu0 %v679
    %681 = vmatprep.subr.mxu0 0.0
    %v682 = vand.u32 %v107, 4294901760
    %v683 = vsub.f32 %v107, %v682
    %v684 = vand.u32 %v683, 4294901760
    %685 = vmatpush1.msra.mxu0 %v684
    %686 = vmatprep.subr.mxu0 0.0
    %687 = vmatpush1.msra.mxu0 0.0
    %688 = vmatprep.subr.mxu0 0.0
    %689 = vmatpush1.msra.mxu0 0.0
    %690 = vmatprep.subr.mxu0 0.0
    %691 = vmatpush1.msra.mxu0 0.0
    %692 = vmatprep.subr.mxu0 0.0
    %693 = vmatpush1.msra.mxu0 0.0
    %694 = vmatprep.subr.mxu0 0.0
    %695 = vmatpush1.msra.mxu0 0.0
    %696 = vmatprep.subr.mxu0 0.0
    %697 = vmatpush1.msra.mxu0 0.0
    %698 = vmatprep.subr.mxu0 0.0
    %699 = vmatpush1.msra.mxu0 0.0
    %700 = vmatprep.subr.mxu0 0.0
    %701 = vmatpush1.msra.mxu0 0.0
    %702 = vmatprep.subr.mxu0 0.0
    %703 = vmatpush1.msra.mxu0 0.0
    %704 = vmatprep.subr.mxu0 0.0
    %705 = vmatpush1.msra.mxu0 0.0
    %706 = vmatprep.subr.mxu0 0.0
    %707 = vmatpush1.msra.mxu0 0.0
    %708 = vmatprep.subr.mxu0 0.0
    %709 = vmatpush1.msra.mxu0 0.0
    %710 = vmatprep.subr.mxu0 0.0
    %711 = vmatpush1.msra.mxu0 0.0
    %712 = vmatprep.subr.mxu0 0.0
    %713 = vmatpush1.msra.mxu0 0.0
    %714 = vmatprep.subr.mxu0 0.0
    %715 = vmatpush1.msra.mxu0 0.0
    %716 = vmatprep.subr.mxu0 0.0
    %717 = vmatpush1.msra.mxu0 0.0
    %718 = vmatprep.mubr.f32.mxu0 0.0
    %v719 = vand.u32 %v124, 4294901760
    %720 = vmatmul.mubr.f32.gmra.mrb[0].mxu0 %v719
    %v721 = vpop.f32.mrb[0].mxu0
    %v722 = vadd.f32 %v595, %v721
    %v723 = vpop.f32.mrb[0].mxu0
    %724 = vmatprep.mubr.f32.mxu0 0.0
    %v725 = vand.u32 %v125, 4294901760
    %726 = vmatmul.mubr.f32.gmra.mrb[0].mxu0 %v725
    %v727 = vpop.f32.mrb[0].mxu0
    %v728 = vadd.f32 %v603, %v727
    %v729 = vpop.f32.mrb[0].mxu0
    %730 = vdwg.mxu0
    %731 = vmatprep.subr.mxu0 0.0
    %v732 = vand.u32 %v92, 4294901760
    %733 = vmatpush1.msra.mxu0 %v732
    %734 = vmatprep.subr.mxu0 0.0
    %v735 = vand.u32 %v93, 4294901760
    %736 = vmatpush1.msra.mxu0 %v735
    %737 = vmatprep.subr.mxu0 0.0
    %v738 = vand.u32 %v94, 4294901760
    %739 = vmatpush1.msra.mxu0 %v738
    %740 = vmatprep.subr.mxu0 0.0
    %v741 = vand.u32 %v95, 4294901760
    %742 = vmatpush1.msra.mxu0 %v741
    %743 = vmatprep.subr.mxu0 0.0
    %v744 = vand.u32 %v96, 4294901760
    %745 = vmatpush1.msra.mxu0 %v744
    %746 = vmatprep.subr.mxu0 0.0
    %v747 = vand.u32 %v97, 4294901760
    %748 = vmatpush1.msra.mxu0 %v747
    %749 = vmatprep.subr.mxu0 0.0
    %v750 = vand.u32 %v98, 4294901760
    %751 = vmatpush1.msra.mxu0 %v750
    %752 = vmatprep.subr.mxu0 0.0
    %v753 = vand.u32 %v99, 4294901760
    %754 = vmatpush1.msra.mxu0 %v753
    %755 = vmatprep.subr.mxu0 0.0
    %v756 = vand.u32 %v100, 4294901760
    %757 = vmatpush1.msra.mxu0 %v756
    %758 = vmatprep.subr.mxu0 0.0
    %v759 = vand.u32 %v101, 4294901760
    %760 = vmatpush1.msra.mxu0 %v759
    %761 = vmatprep.subr.mxu0 0.0
    %v762 = vand.u32 %v102, 4294901760
    %763 = vmatpush1.msra.mxu0 %v762
    %764 = vmatprep.subr.mxu0 0.0
    %v765 = vand.u32 %v103, 4294901760
    %766 = vmatpush1.msra.mxu0 %v765
    %767 = vmatprep.subr.mxu0 0.0
    %v768 = vand.u32 %v104, 4294901760
    %769 = vmatpush1.msra.mxu0 %v768
    %770 = vmatprep.subr.mxu0 0.0
    %v771 = vand.u32 %v105, 4294901760
    %772 = vmatpush1.msra.mxu0 %v771
    %773 = vmatprep.subr.mxu0 0.0
    %v774 = vand.u32 %v106, 4294901760
    %775 = vmatpush1.msra.mxu0 %v774
    %776 = vmatprep.subr.mxu0 0.0
    %v777 = vand.u32 %v107, 4294901760
    %778 = vmatpush1.msra.mxu0 %v777
    %779 = vmatprep.subr.mxu0 0.0
    %780 = vmatpush1.msra.mxu0 0.0
    %781 = vmatprep.subr.mxu0 0.0
    %782 = vmatpush1.msra.mxu0 0.0
    %783 = vmatprep.subr.mxu0 0.0
    %784 = vmatpush1.msra.mxu0 0.0
    %785 = vmatprep.subr.mxu0 0.0
    %786 = vmatpush1.msra.mxu0 0.0
    %787 = vmatprep.subr.mxu0 0.0
    %788 = vmatpush1.msra.mxu0 0.0
    %789 = vmatprep.subr.mxu0 0.0
    %790 = vmatpush1.msra.mxu0 0.0
    %791 = vmatprep.subr.mxu0 0.0
    %792 = vmatpush1.msra.mxu0 0.0
    %793 = vmatprep.subr.mxu0 0.0
    %794 = vmatpush1.msra.mxu0 0.0
    %795 = vmatprep.subr.mxu0 0.0
    %796 = vmatpush1.msra.mxu0 0.0
    %797 = vmatprep.subr.mxu0 0.0
    %798 = vmatpush1.msra.mxu0 0.0
    %799 = vmatprep.subr.mxu0 0.0
    %800 = vmatpush1.msra.mxu0 0.0
    %801 = vmatprep.subr.mxu0 0.0
    %802 = vmatpush1.msra.mxu0 0.0
    %803 = vmatprep.subr.mxu0 0.0
    %804 = vmatpush1.msra.mxu0 0.0
    %805 = vmatprep.subr.mxu0 0.0
    %806 = vmatpush1.msra.mxu0 0.0
    %807 = vmatprep.subr.mxu0 0.0
    %808 = vmatpush1.msra.mxu0 0.0
    %809 = vmatprep.subr.mxu0 0.0
    %810 = vmatpush1.msra.mxu0 0.0
    %811 = vmatprep.mubr.f32.mxu0 0.0
    %v812 = vand.u32 %v124, 4294901760
    %813 = vmatmul.mubr.f32.gmra.mrb[0].mxu0 %v812
    %v814 = vpop.f32.mrb[0].mxu0
    %v815 = vadd.f32 %v722, %v814
    %v816 = vpop.f32.mrb[0].mxu0
    %817 = vmatprep.mubr.f32.mxu0 0.0
    %v818 = vand.u32 %v125, 4294901760
    %819 = vmatmul.mubr.f32.gmra.mrb[0].mxu0 %v818
    %v820 = vpop.f32.mrb[0].mxu0
    %v821 = vadd.f32 %v728, %v820
    %v822 = vpop.f32.mrb[0].mxu0
    %823 = vdwg.mxu0
    %824 = vst [vmem:[#allocation7] sm:$0xff] %v815
    %825 = vst [vmem:[#allocation7 + $0x8] sm:$0xff] %v821
    // Predicated region
    $region18: #{tpu_custom_call.1} parent=1 // pred_check
      _
    $region19: #{tpu_custom_call.1} parent=1 // pred_check_branch
      %827 = sbr.rel (0) target = $region21
    $region20: #{tpu_custom_call.1} parent=1 // pred_region
      %s829 = ssub.s32 256, 256
      %830 = vsyncadd [#allocation4], %s829
      %s831 = sshll.u32 [#allocation7], 4
      %s832 = int_to_ptr.vmem [resolvable:$true] %s831
      %837 = dma.vmem_to_hbm [thread:$0]  %s832, 256, %s2, [#allocation4], 128, 128, 8
    $region21: #{tpu_custom_call.1} parent=1 // pred_fallthru
      _
    // Predicated region
    $region22: #{tpu_custom_call.1} parent=1 // pred_check
      _
    $region23: #{tpu_custom_call.1} parent=1 // pred_check_branch
      %839 = sbr.rel (0) target = $region25
    $region24: #{tpu_custom_call.1} parent=1 // pred_region
      %840 = dma.done [#allocation4], 256
    $region25: #{tpu_custom_call.1} parent=1 // pred_fallthru
      _
    %841 = vsyncpa [#allocation3], 1
    %842 = vsyncpa [#allocation6], 1
    %843 = vsyncpa [#allocation4], 1

</llo_original>
